<compile_context>
chip_gen: v6e
topology: v6e:2x2x1
jax: 0.10.0
libtpu: 0.0.40
codegen_flags: <defaults>
</compile_context>

<pallas_src>
import functools

import jax
import jax.numpy as jnp
from jax.experimental import pallas as pl
from jax.experimental.pallas import tpu as pltpu


# ---------------------------------------------------------------------------
# Kernels
# ---------------------------------------------------------------------------

def _se_kernel_single(x_ref, w1t_ref, w2t_ref, o_ref, *, inv_hw):
    """Single-pass kernel: the whole (C, HW) slab of a batch tile is resident."""
    # x_ref  : (Bt, C, HW)   input tile
    # w1t_ref: (C, Cr)       fc[0].weight.T   (pre-transposed in the wrapper)
    # w2t_ref: (Cr, C)       fc[2].weight.T   (pre-transposed in the wrapper)
    # o_ref  : (Bt, HW, C)   output tile, already in flatten(2).transpose(1,2) layout

    # Channel<->spatial transpose (required by the module's output layout anyway).
    # Kept in the input dtype: no full-tile f32 copy.
    xt = jnp.transpose(x_ref[...], (0, 2, 1))                        # (Bt, HW, C)

    # AdaptiveAvgPool2d(1): sublane reduction over HW, accumulated in f32.
    y = jnp.sum(xt, axis=1, dtype=jnp.float32) * inv_hw              # (Bt, C) f32

    # fc: Linear(C,Cr,bias=False) -> ReLU -> Linear(Cr,C,bias=False) -> Sigmoid.
    # Matmul operands take the weights' dtype (pass bf16 weights on v6e/v7x to use the
    # bf16-native MXU); accumulation stays f32 via preferred_element_type.
    h = jnp.maximum(
        jnp.dot(y.astype(w1t_ref.dtype), w1t_ref[...],
                preferred_element_type=jnp.float32), 0.0)            # (Bt, Cr)
    s = jax.nn.sigmoid(
        jnp.dot(h.astype(w2t_ref.dtype), w2t_ref[...],
                preferred_element_type=jnp.float32))                 # (Bt, C) f32

    # x * y.expand_as(x) in the transposed layout: scale broadcasts along sublanes.
    # Multiply runs in the input dtype (cast the small scale once, not the tile).
    o_ref[...] = (xt * s.astype(x_ref.dtype)[:, None, :]).astype(o_ref.dtype)


def _se_kernel_tiled(x_ref, w1t_ref, w2t_ref, o_ref, acc_ref, scale_ref, *, inv_hw):
    """Two-phase HW-tiled kernel. grid = (batch_blocks, 2 phases, hw_blocks)."""
    # x_ref    : (Bt, C, HWt)  input tile (same HW tile is revisited once per phase)
    # o_ref    : (Bt, HWt, C)  output tile (only written during phase 1)
    # acc_ref  : (Bt, C) f32   running spatial sum (VMEM scratch)
    # scale_ref: (Bt, C) f32   sigmoid scale       (VMEM scratch)
    ph = pl.program_id(1)
    hj = pl.program_id(2)

    @pl.when((ph == 0) & (hj == 0))
    def _init():
        acc_ref[...] = jnp.zeros_like(acc_ref)

    @pl.when(ph == 0)
    def _pool():
        # Partial spatial sum of this HW tile; hides under the DMA of this mem-bound kernel.
        acc_ref[...] += jnp.sum(x_ref[...], axis=2, dtype=jnp.float32)

    @pl.when((ph == 1) & (hj == 0))
    def _excite():
        y = acc_ref[...] * inv_hw                                    # (Bt, C) f32
        h = jnp.maximum(
            jnp.dot(y.astype(w1t_ref.dtype), w1t_ref[...],
                    preferred_element_type=jnp.float32), 0.0)
        scale_ref[...] = jax.nn.sigmoid(
            jnp.dot(h.astype(w2t_ref.dtype), w2t_ref[...],
                    preferred_element_type=jnp.float32))

    @pl.when(ph == 1)
    def _scale():
        xt = jnp.transpose(x_ref[...], (0, 2, 1))                    # (Bt, HWt, C)
        s = scale_ref[...].astype(x_ref.dtype)
        o_ref[...] = (xt * s[:, None, :]).astype(o_ref.dtype)


# ---------------------------------------------------------------------------
# Wrapper
# ---------------------------------------------------------------------------

def _default_vmem_budgets():
    """(block-sizing budget, vmem_limit_bytes) based on the local TPU generation."""
    try:
        cap = getattr(pltpu.get_tpu_info(), "vmem_capacity_bytes", None)
    except Exception:
        cap = None
    if cap is None:
        cap = 64 * 1024 * 1024                       # conservative (v7x-sized) fallback
    if cap <= 64 * 1024 * 1024:
        # v7x-class: 64 MiB physical VMEM per TensorCore -> stay well below it.
        return 20 * 1024 * 1024, 48 * 1024 * 1024
    # v5e / v6e: 128 MiB physical (scoped default is only 16-32 MiB -> raise it).
    return 40 * 1024 * 1024, 96 * 1024 * 1024


def se_forward(x_nchw, w1, w2, *, block_batch=None, hw_block=None,
               vmem_budget_bytes=None, vmem_limit_bytes=None,
               force_hw_tiling=False):
    """SE forward. x_nchw: (b, c, h, w). Returns (b, h*w, c), like the PyTorch module."""
    b, c, h, w = x_nchw.shape
    hw = h * w
    cr = w1.shape[0]
    assert w1.shape == (cr, c) and w2.shape == (c, cr)

    x3 = x_nchw.reshape(b, c, hw)
    w1t = jnp.transpose(w1)       # (c, cr)
    w2t = jnp.transpose(w2)       # (cr, c)

    if vmem_budget_bytes is None or vmem_limit_bytes is None:
        budget_def, limit_def = _default_vmem_budgets()
        vmem_budget_bytes = vmem_budget_bytes or budget_def
        vmem_limit_bytes = vmem_limit_bytes or limit_def

    itemsize = x_nchw.dtype.itemsize
    # Fixed VMEM: double-buffered weight blocks + 1 MiB headroom for small temporaries.
    fixed_bytes = 2 * 2 * c * cr * w1t.dtype.itemsize + (1 << 20)
    # Per batch element: 2x-buffered input block + 2x-buffered output block + one
    # in-kernel transposed temporary (all in the input dtype).
    per_batch_bytes = (2 + 2 + 1) * c * hw * itemsize
    avail = int(vmem_budget_bytes * 0.9) - fixed_bytes

    compiler = functools.partial(pltpu.CompilerParams,
                                 vmem_limit_bytes=int(vmem_limit_bytes))
    out_shape = jax.ShapeDtypeStruct((b, hw, c), x_nchw.dtype)

    use_hw_tiling = force_hw_tiling or per_batch_bytes > avail

    if not use_hw_tiling:
        # -------- single-pass, batch-tiled path --------
        if block_batch is None:
            cap = max(1, avail // per_batch_bytes)
            if b >= 2:
                # Keep >=2 grid steps: enables pipelining and, on v7x, megacore
                # sharding of the "parallel" batch axis across the 2 TensorCores.
                cap = min(cap, b // 2)
            block_batch = max(d for d in range(1, b + 1) if b % d == 0 and d <= cap)
        assert b % block_batch == 0, "block_batch must divide batch size"
        grid = (b // block_batch,)
        return pl.pallas_call(
            functools.partial(_se_kernel_single, inv_hw=1.0 / hw),
            out_shape=out_shape,
            grid=grid,
            in_specs=[
                pl.BlockSpec((block_batch, c, hw), lambda i: (i, 0, 0)),
                pl.BlockSpec((c, cr), lambda i: (0, 0)),
                pl.BlockSpec((cr, c), lambda i: (0, 0)),
            ],
            out_specs=pl.BlockSpec((block_batch, hw, c), lambda i: (i, 0, 0)),
            compiler_params=compiler(dimension_semantics=("parallel",)),
        )(x3, w1t, w2t)

    # -------- two-phase HW-tiled path (large C*HW) --------
    if block_batch is None:
        block_batch = 1
    assert b % block_batch == 0, "block_batch must divide batch size"
    if hw_block is None:
        per_hw_bytes = (2 + 2 + 1) * block_batch * c * itemsize
        cap_hw = max(128, avail // per_hw_bytes)
        hw_block = hw
        if hw % 128 == 0:
            for cand in range(128, hw + 1, 128):
                if hw % cand == 0 and cand <= cap_hw:
                    hw_block = cand
        # TODO(synk): pad HW up to a multiple of 128 in the wrapper (and slice the
        # output) so non-128-divisible feature maps (e.g. 56x56) can also be HW-tiled.
    assert hw % hw_block == 0, "hw_block must divide h*w"

    grid = (b // block_batch, 2, hw // hw_block)
    return pl.pallas_call(
        functools.partial(_se_kernel_tiled, inv_hw=1.0 / hw),
        out_shape=out_shape,
        grid=grid,
        in_specs=[
            pl.BlockSpec((block_batch, c, hw_block), lambda i, p, j: (i, 0, j)),
            pl.BlockSpec((c, cr), lambda i, p, j: (0, 0)),
            pl.BlockSpec((cr, c), lambda i, p, j: (0, 0)),
        ],
        # Phase 0 parks the output window on block (i, 0, 0) (never flushed mid-phase);
        # phase 1 walks the HW blocks and stores lane-dense (HWt, C) tiles.
        out_specs=pl.BlockSpec((block_batch, hw_block, c),
                               lambda i, p, j: (i, j * p, 0)),
        scratch_shapes=[
            pltpu.VMEM((block_batch, c), jnp.float32),   # pooled-sum accumulator
            pltpu.VMEM((block_batch, c), jnp.float32),   # sigmoid scale
        ],
        compiler_params=compiler(
            dimension_semantics=("parallel", "arbitrary", "arbitrary")),
    )(x3, w1t, w2t)


# ---------------------------------------------------------------------------
# Reference + demo
# ---------------------------------------------------------------------------

def se_reference(x_nchw, w1, w2):
    b, c, h, w = x_nchw.shape
    xf = x_nchw.astype(jnp.float32)
    y = jnp.mean(xf, axis=(2, 3))                               # (b, c)
    y = jnp.maximum(y @ w1.astype(jnp.float32).T, 0.0)          # (b, cr)
    y = jax.nn.sigmoid(y @ w2.astype(jnp.float32).T)            # (b, c)
    out = xf * y[:, :, None, None]                              # (b, c, h, w)
    return out.reshape(b, c, h * w).transpose(0, 2, 1).astype(x_nchw.dtype)


if __name__ == "__main__":
    # Lane-dense shapes: C = 128 keeps the (HW, C) output stores unmasked;
    # HW = 16*16 = 256 lets the demo also exercise the HW-tiled path (tile = 128).
    b, c, h, w = 4, 128, 16, 16
    reduction = 16
    cr = c // reduction

    key = jax.random.PRNGKey(0)
    kx, k1, k2 = jax.random.split(key, 3)

    x = jax.random.normal(kx, (b, c, h, w), dtype=jnp.float32)
    # kaiming_normal_(mode='fan_out', nonlinearity='relu'): std = sqrt(2 / fan_out);
    # torch Linear weight is (out_features, in_features) -> fan_out = out_features.
    w1 = jax.random.normal(k1, (cr, c), dtype=jnp.float32) * jnp.sqrt(2.0 / cr)
    w2 = jax.random.normal(k2, (c, cr), dtype=jnp.float32) * jnp.sqrt(2.0 / c)

    ref = se_reference(x, w1, w2)

    # Path 1: single-pass, batch-tiled (auto block_batch -> 2, grid=(2,)).
    out = jax.block_until_ready(se_forward(x, w1, w2))
    assert out.shape == (b, h * w, c)
    assert jnp.allclose(out, ref, atol=1e-5, rtol=1e-5)

    # Path 2: two-phase HW-tiled path (selected automatically when a (C, HW) slab does
    # not fit the VMEM budget; forced here at small shapes to exercise it).
    out_tiled = jax.block_until_ready(
        se_forward(x, w1, w2, force_hw_tiling=True, block_batch=2, hw_block=128))
    assert out_tiled.shape == (b, h * w, c)
    assert jnp.allclose(out_tiled, ref, atol=1e-5, rtol=1e-5)

    print("KERNEL_OK")
</pallas_src>

<mosaic_0001>
module attributes {stable_mosaic.version = 11 : i64} {
  func.func @_se_kernel_single(%arg0: i32, %arg1: memref<2x128x256xf32, #tpu.memory_space<vmem>>, %arg2: memref<128x8xf32, #tpu.memory_space<vmem>>, %arg3: memref<8x128xf32, #tpu.memory_space<vmem>>, %arg4: memref<2x256x128xf32, #tpu.memory_space<vmem>>) attributes {dimension_semantics = [#tpu.dimension_semantics<parallel>], iteration_bounds = array<i64: 2>, scalar_prefetch = 0 : i64, scratch_operands = 0 : i64, tpu.core_type = #tpu.core_type<tc>, window_params = [{transform_indices = @transform_0, window_bounds = array<i64: 2, 128, 256>}, {pipeline_mode = #tpu.pipeline_mode<synchronous>, transform_indices = @transform_1, window_bounds = array<i64: 128, 8>}, {pipeline_mode = #tpu.pipeline_mode<synchronous>, transform_indices = @transform_2, window_bounds = array<i64: 8, 128>}, {transform_indices = @transform_3, window_bounds = array<i64: 2, 256, 128>}]} {
    %c0 = arith.constant 0 : index
    %c0_0 = arith.constant 0 : index
    %c0_1 = arith.constant 0 : index
    %0 = vector.load %arg1[%c0, %c0_0, %c0_1] : memref<2x128x256xf32, #tpu.memory_space<vmem>>, vector<2x128x256xf32>
    %1 = tpu.transpose %0, [0, 2, 1] : vector<2x128x256xf32> -> vector<2x256x128xf32>
    %cst = arith.constant dense<0.000000e+00> : vector<2x128xf32>
    %2 = vector.multi_reduction <add>, %1, %cst [1] : vector<2x256x128xf32> to vector<2x128xf32>
    %cst_2 = arith.constant 3.906250e-03 : f32
    %3 = vector.broadcast %cst_2 : f32 to vector<2x128xf32>
    %4 = arith.mulf %2, %3 : vector<2x128xf32>
    %c0_3 = arith.constant 0 : index
    %c0_4 = arith.constant 0 : index
    %5 = vector.load %arg2[%c0_3, %c0_4] : memref<128x8xf32, #tpu.memory_space<vmem>>, vector<128x8xf32>
    %cst_5 = arith.constant dense<0.000000e+00> : vector<2x8xf32>
    %6 = tpu.matmul %4, %5, %cst_5 {dimension_numbers = #tpu.dot_dimension_numbers<[1], [0], [0], [1], [0, 0, 1, 1], [], []>} : vector<2x128xf32>, vector<128x8xf32>, vector<2x8xf32> -> vector<2x8xf32>
    %cst_6 = arith.constant 0.000000e+00 : f32
    %7 = vector.broadcast %cst_6 : f32 to vector<2x8xf32>
    %8 = arith.maximumf %6, %7 : vector<2x8xf32>
    %c0_7 = arith.constant 0 : index
    %c0_8 = arith.constant 0 : index
    %9 = vector.load %arg3[%c0_7, %c0_8] : memref<8x128xf32, #tpu.memory_space<vmem>>, vector<8x128xf32>
    %cst_9 = arith.constant dense<0.000000e+00> : vector<2x128xf32>
    %10 = tpu.matmul %8, %9, %cst_9 {dimension_numbers = #tpu.dot_dimension_numbers<[1], [0], [0], [1], [0, 0, 1, 1], [], []>} : vector<2x8xf32>, vector<8x128xf32>, vector<2x128xf32> -> vector<2x128xf32>
    %11 = arith.negf %10 : vector<2x128xf32>
    %12 = math.exp %11 : vector<2x128xf32>
    %cst_10 = arith.constant 1.000000e+00 : f32
    %13 = vector.broadcast %cst_10 : f32 to vector<2x128xf32>
    %14 = arith.addf %13, %12 : vector<2x128xf32>
    %15 = arith.divf %13, %14 : vector<2x128xf32>
    %16 = vector.shape_cast %15 : vector<2x128xf32> to vector<2x1x128xf32>
    %17 = vector.broadcast %16 : vector<2x1x128xf32> to vector<2x256x128xf32>
    %18 = arith.mulf %1, %17 : vector<2x256x128xf32>
    %c0_11 = arith.constant 0 : index
    %c0_12 = arith.constant 0 : index
    %c0_13 = arith.constant 0 : index
    %19 = vector.load %arg4[%c0_11, %c0_12, %c0_13] : memref<2x256x128xf32, #tpu.memory_space<vmem>>, vector<2x256x128xf32>
    tpu.vector_store %arg4[%c0_11, %c0_12, %c0_13], %18 {strides = array<i32>} : memref<2x256x128xf32, #tpu.memory_space<vmem>>, vector<2x256x128xf32>,
    return
  }
  func.func @transform_0(%arg0: i32) -> (i32, i32, i32) {
    %c0_i32 = arith.constant 0 : i32
    %c0_i32_0 = arith.constant 0 : i32
    %c0_i32_1 = arith.constant 0 : i32
    return %arg0, %c0_i32, %c0_i32_0 : i32, i32, i32
  }
  func.func @transform_1(%arg0: i32) -> (i32, i32) {
    %c0_i32 = arith.constant 0 : i32
    %c0_i32_0 = arith.constant 0 : i32
    %c0_i32_1 = arith.constant 0 : i32
    return %c0_i32, %c0_i32_0 : i32, i32
  }
  func.func @transform_2(%arg0: i32) -> (i32, i32) {
    %c0_i32 = arith.constant 0 : i32
    %c0_i32_0 = arith.constant 0 : i32
    %c0_i32_1 = arith.constant 0 : i32
    return %c0_i32, %c0_i32_0 : i32, i32
  }
  func.func @transform_3(%arg0: i32) -> (i32, i32, i32) {
    %c0_i32 = arith.constant 0 : i32
    %c0_i32_0 = arith.constant 0 : i32
    %c0_i32_1 = arith.constant 0 : i32
    return %arg0, %c0_i32, %c0_i32_0 : i32, i32, i32
  }
}

</mosaic_0001>

<llo_original>
// kernel: tpu_custom_call.1
$region0: #{tpu_custom_call.1}
  #allocation0 [shape = 'u32[]', space=smem, size = 0x4, offset = 0x4, fixed_abs, tag = 'smem constant byte address 0x4 - core index']
  #allocation1 [shape = 'u32[144,128]{1,0:T(1,128)}', space=vmem, size = 0x12000, scoped, tag = 'internal scratch']
  %s0 = inlined_call_operand.hbm [shape: f32[4,128,256], index: 0, kind: input, shape index: {}]
  %s1 = inlined_call_operand.vmem [shape: f32[128,8], index: 1, kind: input, shape index: {}]
  %s2 = inlined_call_operand.vmem [shape: f32[8,128], index: 2, kind: input, shape index: {}]
  %s3 = inlined_call_operand.hbm [shape: f32[4,256,128], index: 3, kind: output, shape index: {}]
  %s4 = sld [smem:[#allocation0]]
  $region49: #{tpu_custom_call.1} parent=0
    _
  %s6 = ssub.s32 1, %s4
  %s7 = scalar_select 0, %s6, %s4
  $region1: #{tpu_custom_call.1} parent=0
    #allocation2 [shape = 'u8[524288]{0}', space=vmem, size = 0x80000, scoped, tag = 'input window, operand 0']
    #allocation3 [shape = 's32[2]{0}', space=sflag, size = 0x8, scoped, tag = 'scoped memory for tpu_custom_call.1']
    #allocation4 [shape = 's32[2]{0}', space=sflag, size = 0x8, scoped, tag = 'scoped memory for tpu_custom_call.1']
    #allocation5 [shape = 'u8[524288]{0}', space=vmem, size = 0x80000, scoped, tag = 'output window, operand 0']
    %8 = vsyncpa [#allocation3], 0
    %s9 = scalar_lea.sflag [#allocation3], 1
    %10 = vsyncpa %s9, 0
    %11 = vsyncpa [#allocation4], 0
    %s12 = scalar_lea.sflag [#allocation4], 1
    %13 = vsyncpa %s12, 0
    loop: start=0, step=1, limit=4
    $region2: #{tpu_custom_call.1} parent=1 // loop_pre_header
      _
    $region3: #{tpu_custom_call.1} parent=1 // loop_header
      %s15 = sphi 0, %s19
      %p16 = scmp.ge.s32.totalorder %s15, 4
      %s25 = sphi 0, %s27
      %s28 = sphi 0, %s25
      %s29 = sphi 0, %s28
      %s45 = sphi 0, %s29
      %s49 = sphi 0, %s49
      %s51 = sphi 0, %s49
      %s52 = sphi 0, %s51
      %s66 = sphi 0, %s52
      %s70 = sphi 0, %s70
      %s72 = sphi 0, %s70
      %s73 = sphi 0, %s72
      %s87 = sphi 0, %s73
      %s93 = sphi 0, %s95
      %s96 = sphi 0, %s93
      %s97 = sphi 0, %s96
      %s113 = sphi 0, %s97
    $region4: #{tpu_custom_call.1} parent=1 // loop_header_branch
      %18 = sbr.rel (%p16) target = $region8
    $region5: #{tpu_custom_call.1} parent=1 // loop_body
      %s20 = ssub.s32 %s15, 1
      %s21 = ssub.s32 %s15, 2
      %s22 = sadd.s32 %s15, 1
      %s23 = ssub.s32 %s15, %s22
      %p24 = scmp.eq.s32.totalorder %s23, 0
      %s26 = sadd.s32 %s25, 1
      %s27 = scalar_select %p24, %s25, %s26
      %p30 = pneg %p24
      %p31 = scmp.eq.s32.totalorder %s15, 1
      %p32 = por %p30, %p31
      %p33 = scmp.ne.s32.totalorder %s25, %s28
      %p34 = scmp.eq.s32.totalorder %s15, 0
      %p35 = por %p33, %p34
      %p36 = scmp.ne.s32.totalorder %s25, %s28
      %p37 = scmp.eq.s32.totalorder %s20, 1
      %p38 = por %p36, %p37
      %p39 = scmp.ne.s32.totalorder %s28, %s29
      %p40 = scmp.eq.s32.totalorder %s20, 0
      %p41 = por %p39, %p40
      %p42 = scmp.ne.s32.totalorder %s28, %s29
      %p43 = scmp.eq.s32.totalorder %s21, 1
      %p44 = por %p42, %p43
      %p46 = scmp.ne.s32.totalorder %s29, %s45
      %p47 = scmp.eq.s32.totalorder %s21, 0
      %p48 = por %p46, %p47
      %s50 = sadd.s32 %s49, 1
      %p53 = scmp.eq.s32.totalorder %s15, 1
      %p54 = scmp.ne.s32.totalorder %s49, %s51
      %p55 = scmp.eq.s32.totalorder %s15, 0
      %p56 = por %p54, %p55
      %p57 = scmp.ne.s32.totalorder %s49, %s51
      %p58 = scmp.eq.s32.totalorder %s20, 1
      %p59 = por %p57, %p58
      %p60 = scmp.ne.s32.totalorder %s51, %s52
      %p61 = scmp.eq.s32.totalorder %s20, 0
      %p62 = por %p60, %p61
      %p63 = scmp.ne.s32.totalorder %s51, %s52
      %p64 = scmp.eq.s32.totalorder %s21, 1
      %p65 = por %p63, %p64
      %p67 = scmp.ne.s32.totalorder %s52, %s66
      %p68 = scmp.eq.s32.totalorder %s21, 0
      %p69 = por %p67, %p68
      %s71 = sadd.s32 %s70, 1
      %p74 = scmp.eq.s32.totalorder %s15, 1
      %p75 = scmp.ne.s32.totalorder %s70, %s72
      %p76 = scmp.eq.s32.totalorder %s15, 0
      %p77 = por %p75, %p76
      %p78 = scmp.ne.s32.totalorder %s70, %s72
      %p79 = scmp.eq.s32.totalorder %s20, 1
      %p80 = por %p78, %p79
      %p81 = scmp.ne.s32.totalorder %s72, %s73
      %p82 = scmp.eq.s32.totalorder %s20, 0
      %p83 = por %p81, %p82
      %p84 = scmp.ne.s32.totalorder %s72, %s73
      %p85 = scmp.eq.s32.totalorder %s21, 1
      %p86 = por %p84, %p85
      %p88 = scmp.ne.s32.totalorder %s73, %s87
      %p89 = scmp.eq.s32.totalorder %s21, 0
      %p90 = por %p88, %p89
      %s91 = ssub.s32 %s15, %s22
      %p92 = scmp.eq.s32.totalorder %s91, 0
      %s94 = sadd.s32 %s93, 1
      %s95 = scalar_select %p92, %s93, %s94
      %p98 = pneg %p92
      %p99 = scmp.eq.s32.totalorder %s15, 1
      %p100 = por %p98, %p99
      %p101 = scmp.ne.s32.totalorder %s93, %s96
      %p102 = scmp.eq.s32.totalorder %s15, 0
      %p103 = por %p101, %p102
      %p104 = scmp.ne.s32.totalorder %s93, %s96
      %p105 = scmp.eq.s32.totalorder %s20, 1
      %p106 = por %p104, %p105
      %p107 = scmp.ne.s32.totalorder %s96, %s97
      %p108 = scmp.eq.s32.totalorder %s20, 0
      %p109 = por %p107, %p108
      %p110 = scmp.ne.s32.totalorder %s96, %s97
      %p111 = scmp.eq.s32.totalorder %s21, 1
      %p112 = por %p110, %p111
      %p114 = scmp.ne.s32.totalorder %s97, %s113
      %p115 = scmp.eq.s32.totalorder %s21, 0
      %p116 = por %p114, %p115
      %p117 = scmp.le.s32.totalorder 1, %s15
      %p118 = scmp.lt.s32.totalorder %s15, 3
      %p119 = pnand %p117, %p118
      %p120 = pneg %p119
      // Predicated region
      $region9: #{tpu_custom_call.1} parent=5 // pred_check
        _
      $region10: #{tpu_custom_call.1} parent=5 // pred_check_branch
        %122 = sbr.rel (%p119) target = $region12
      $region11: #{tpu_custom_call.1} parent=5 // pred_region
        %s123 = ssub.s32 %s15, 1
        // Predicated region
        $region13: #{tpu_custom_call.1} parent=11 // pred_check
          %p124 = pneg %p62
        $region14: #{tpu_custom_call.1} parent=11 // pred_check_branch
          %126 = sbr.rel (%p124) target = $region16
        $region15: #{tpu_custom_call.1} parent=11 // pred_region
          _
        $region16: #{tpu_custom_call.1} parent=11 // pred_fallthru
          _
        // Predicated region
        $region17: #{tpu_custom_call.1} parent=11 // pred_check
          %p127 = pneg %p83
        $region18: #{tpu_custom_call.1} parent=11 // pred_check_branch
          %129 = sbr.rel (%p127) target = $region20
        $region19: #{tpu_custom_call.1} parent=11 // pred_region
          _
        $region20: #{tpu_custom_call.1} parent=11 // pred_fallthru
          _
      $region12: #{tpu_custom_call.1} parent=5 // pred_fallthru
        _
      %p130 = scmp.lt.s32.totalorder %s15, 2
      // Predicated region
      $region21: #{tpu_custom_call.1} parent=5 // pred_check
        %p131 = pneg %p130
      $region22: #{tpu_custom_call.1} parent=5 // pred_check_branch
        %133 = sbr.rel (%p131) target = $region24
      $region23: #{tpu_custom_call.1} parent=5 // pred_region
        // Predicated region
        $region25: #{tpu_custom_call.1} parent=23 // pred_check
          %p134 = pneg %p35
        $region26: #{tpu_custom_call.1} parent=23 // pred_check_branch
          %136 = sbr.rel (%p134) target = $region28
        $region27: #{tpu_custom_call.1} parent=23 // pred_region
          %s137 = sand.u32 %s25, 1
          %s138 = scalar_lea.sflag [#allocation3], %s137
          %s139 = sand.u32 %s25, 1
          %s140 = smul.addr %s139, 512
          %s141 = scalar_lea.vmem [#allocation2], %s140
          %s142 = smul.u32 2, %s15
          %s144 = ssub.s32 8192, 8192
          %145 = vsyncadd %s138, %s144
          %s146 = smul.addr %s142, 32
          %s147 = smul.addr %s146, 128
          %s148 = scalar_lea.hbm %s0, %s147
          %s149 = sshll.u32 %s141, 4
          %s150 = int_to_ptr.vmem [resolvable:$true] %s149
          %155 = dma.hbm_to_vmem [thread:$0]  %s148, 8192, %s150, %s138, 256, 256, 16
        $region28: #{tpu_custom_call.1} parent=23 // pred_fallthru
          _
      $region24: #{tpu_custom_call.1} parent=5 // pred_fallthru
        _
      %p156 = scmp.le.s32.totalorder 1, %s15
      %p157 = scmp.lt.s32.totalorder %s15, 3
      %p158 = pnand %p156, %p157
      %p159 = pneg %p158
      // Predicated region
      $region29: #{tpu_custom_call.1} parent=5 // pred_check
        _
      $region30: #{tpu_custom_call.1} parent=5 // pred_check_branch
        %161 = sbr.rel (%p158) target = $region32
      $region31: #{tpu_custom_call.1} parent=5 // pred_region
        %s162 = ssub.s32 %s15, 1
        %s163 = sand.u32 %s28, 1
        %s164 = scalar_lea.sflag [#allocation3], %s163
        %s165 = sand.u32 %s28, 1
        %s166 = smul.addr %s165, 512
        %s167 = scalar_lea.vmem [#allocation2], %s166
        // Predicated region
        $region33: #{tpu_custom_call.1} parent=31 // pred_check
          %p168 = pneg %p41
        $region34: #{tpu_custom_call.1} parent=31 // pred_check_branch
          %170 = sbr.rel (%p168) target = $region36
        $region35: #{tpu_custom_call.1} parent=31 // pred_region
          %171 = dma.done %s164, 8192
        $region36: #{tpu_custom_call.1} parent=31 // pred_fallthru
          _
        %s172 = sand.u32 %s28, 1
        %s173 = scalar_lea.sflag [#allocation3], %s172
        %s174 = sand.u32 %s28, 1
        %s175 = smul.addr %s174, 512
        %s176 = scalar_lea.vmem [#allocation2], %s175
        %p177 = pneg %p41
        %p178 = pneg %p38
        %p179 = pneg %p62
        %p180 = pneg %p59
        %p181 = pneg %p83
        %p182 = pneg %p80
        %p183 = pneg %p109
        %p184 = pneg %p106
        %s185 = sand.u32 %s96, 1
        %s186 = scalar_lea.sflag [#allocation4], %s185
        %s187 = sand.u32 %s96, 1
        %s188 = smul.addr %s187, 512
        %s189 = scalar_lea.vmem [#allocation5], %s188
        %s190 = smul.u32 2, %s20
        %s191 = smul.u32 2, %s20
        %v192 = vld [vmem:[%s167] sm:$0xff]
        %v193 = vld [vmem:[%s167 + $0x8] sm:$0xff]
        %v194 = vld [vmem:[%s167 + $0x10] sm:$0xff]
        %v195 = vld [vmem:[%s167 + $0x18] sm:$0xff]
        %v196 = vld [vmem:[%s167 + $0x20] sm:$0xff]
        %v197 = vld [vmem:[%s167 + $0x28] sm:$0xff]
        %v198 = vld [vmem:[%s167 + $0x30] sm:$0xff]
        %v199 = vld [vmem:[%s167 + $0x38] sm:$0xff]
        %v200 = vld [vmem:[%s167 + $0x40] sm:$0xff]
        %v201 = vld [vmem:[%s167 + $0x48] sm:$0xff]
        %v202 = vld [vmem:[%s167 + $0x50] sm:$0xff]
        %v203 = vld [vmem:[%s167 + $0x58] sm:$0xff]
        %v204 = vld [vmem:[%s167 + $0x60] sm:$0xff]
        %v205 = vld [vmem:[%s167 + $0x68] sm:$0xff]
        %v206 = vld [vmem:[%s167 + $0x70] sm:$0xff]
        %v207 = vld [vmem:[%s167 + $0x78] sm:$0xff]
        %v208 = vld [vmem:[%s167 + $0x80] sm:$0xff]
        %v209 = vld [vmem:[%s167 + $0x88] sm:$0xff]
        %v210 = vld [vmem:[%s167 + $0x90] sm:$0xff]
        %v211 = vld [vmem:[%s167 + $0x98] sm:$0xff]
        %v212 = vld [vmem:[%s167 + $0xa0] sm:$0xff]
        %v213 = vld [vmem:[%s167 + $0xa8] sm:$0xff]
        %v214 = vld [vmem:[%s167 + $0xb0] sm:$0xff]
        %v215 = vld [vmem:[%s167 + $0xb8] sm:$0xff]
        %v216 = vld [vmem:[%s167 + $0xc0] sm:$0xff]
        %v217 = vld [vmem:[%s167 + $0xc8] sm:$0xff]
        %v218 = vld [vmem:[%s167 + $0xd0] sm:$0xff]
        %v219 = vld [vmem:[%s167 + $0xd8] sm:$0xff]
        %v220 = vld [vmem:[%s167 + $0xe0] sm:$0xff]
        %v221 = vld [vmem:[%s167 + $0xe8] sm:$0xff]
        %v222 = vld [vmem:[%s167 + $0xf0] sm:$0xff]
        %v223 = vld [vmem:[%s167 + $0xf8] sm:$0xff]
        %v224 = vld [vmem:[%s167 + $0x100] sm:$0xff]
        %v225 = vld [vmem:[%s167 + $0x108] sm:$0xff]
        %v226 = vld [vmem:[%s167 + $0x110] sm:$0xff]
        %v227 = vld [vmem:[%s167 + $0x118] sm:$0xff]
        %v228 = vld [vmem:[%s167 + $0x120] sm:$0xff]
        %v229 = vld [vmem:[%s167 + $0x128] sm:$0xff]
        %v230 = vld [vmem:[%s167 + $0x130] sm:$0xff]
        %v231 = vld [vmem:[%s167 + $0x138] sm:$0xff]
        %v232 = vld [vmem:[%s167 + $0x140] sm:$0xff]
        %v233 = vld [vmem:[%s167 + $0x148] sm:$0xff]
        %v234 = vld [vmem:[%s167 + $0x150] sm:$0xff]
        %v235 = vld [vmem:[%s167 + $0x158] sm:$0xff]
        %v236 = vld [vmem:[%s167 + $0x160] sm:$0xff]
        %v237 = vld [vmem:[%s167 + $0x168] sm:$0xff]
        %v238 = vld [vmem:[%s167 + $0x170] sm:$0xff]
        %v239 = vld [vmem:[%s167 + $0x178] sm:$0xff]
        %v240 = vld [vmem:[%s167 + $0x180] sm:$0xff]
        %v241 = vld [vmem:[%s167 + $0x188] sm:$0xff]
        %v242 = vld [vmem:[%s167 + $0x190] sm:$0xff]
        %v243 = vld [vmem:[%s167 + $0x198] sm:$0xff]
        %v244 = vld [vmem:[%s167 + $0x1a0] sm:$0xff]
        %v245 = vld [vmem:[%s167 + $0x1a8] sm:$0xff]
        %v246 = vld [vmem:[%s167 + $0x1b0] sm:$0xff]
        %v247 = vld [vmem:[%s167 + $0x1b8] sm:$0xff]
        %v248 = vld [vmem:[%s167 + $0x1c0] sm:$0xff]
        %v249 = vld [vmem:[%s167 + $0x1c8] sm:$0xff]
        %v250 = vld [vmem:[%s167 + $0x1d0] sm:$0xff]
        %v251 = vld [vmem:[%s167 + $0x1d8] sm:$0xff]
        %v252 = vld [vmem:[%s167 + $0x1e0] sm:$0xff]
        %v253 = vld [vmem:[%s167 + $0x1e8] sm:$0xff]
        %v254 = vld [vmem:[%s167 + $0x1f0] sm:$0xff]
        %v255 = vld [vmem:[%s167 + $0x1f8] sm:$0xff]
        %256 = vxpose.xlu0.b32.start [1/16] %v192, 128
        %257 = vxpose.xlu0.b32.cont [2/16] %v194, 128
        %258 = vxpose.xlu0.b32.cont [3/16] %v196, 128
        %259 = vxpose.xlu0.b32.cont [4/16] %v198, 128
        %260 = vxpose.xlu0.b32.cont [5/16] %v200, 128
        %261 = vxpose.xlu0.b32.cont [6/16] %v202, 128
        %262 = vxpose.xlu0.b32.cont [7/16] %v204, 128
        %263 = vxpose.xlu0.b32.cont [8/16] %v206, 128
        %264 = vxpose.xlu0.b32.cont [9/16] %v208, 128
        %265 = vxpose.xlu0.b32.cont [10/16] %v210, 128
        %266 = vxpose.xlu0.b32.cont [11/16] %v212, 128
        %267 = vxpose.xlu0.b32.cont [12/16] %v214, 128
        %268 = vxpose.xlu0.b32.cont [13/16] %v216, 128
        %269 = vxpose.xlu0.b32.cont [14/16] %v218, 128
        %270 = vxpose.xlu0.b32.cont [15/16] %v220, 128
        %271 = vxpose.xlu0.b32.end [16/16] %v222, 128
        %v272 = vpop.trf.xlu0
        %v273 = vpop.trf.xlu0
        %v274 = vpop.trf.xlu0
        %v275 = vpop.trf.xlu0
        %v276 = vpop.trf.xlu0
        %v277 = vpop.trf.xlu0
        %v278 = vpop.trf.xlu0
        %v279 = vpop.trf.xlu0
        %v280 = vpop.trf.xlu0
        %v281 = vpop.trf.xlu0
        %v282 = vpop.trf.xlu0
        %v283 = vpop.trf.xlu0
        %v284 = vpop.trf.xlu0
        %v285 = vpop.trf.xlu0
        %v286 = vpop.trf.xlu0
        %v287 = vpop.trf.xlu0
        %288 = vxpose.xlu0.b32.start [1/16] %v193, 128
        %289 = vxpose.xlu0.b32.cont [2/16] %v195, 128
        %290 = vxpose.xlu0.b32.cont [3/16] %v197, 128
        %291 = vxpose.xlu0.b32.cont [4/16] %v199, 128
        %292 = vxpose.xlu0.b32.cont [5/16] %v201, 128
        %293 = vxpose.xlu0.b32.cont [6/16] %v203, 128
        %294 = vxpose.xlu0.b32.cont [7/16] %v205, 128
        %295 = vxpose.xlu0.b32.cont [8/16] %v207, 128
        %296 = vxpose.xlu0.b32.cont [9/16] %v209, 128
        %297 = vxpose.xlu0.b32.cont [10/16] %v211, 128
        %298 = vxpose.xlu0.b32.cont [11/16] %v213, 128
        %299 = vxpose.xlu0.b32.cont [12/16] %v215, 128
        %300 = vxpose.xlu0.b32.cont [13/16] %v217, 128
        %301 = vxpose.xlu0.b32.cont [14/16] %v219, 128
        %302 = vxpose.xlu0.b32.cont [15/16] %v221, 128
        %303 = vxpose.xlu0.b32.end [16/16] %v223, 128
        %v304 = vpop.trf.xlu0
        %v305 = vpop.trf.xlu0
        %v306 = vpop.trf.xlu0
        %v307 = vpop.trf.xlu0
        %v308 = vpop.trf.xlu0
        %v309 = vpop.trf.xlu0
        %v310 = vpop.trf.xlu0
        %v311 = vpop.trf.xlu0
        %v312 = vpop.trf.xlu0
        %v313 = vpop.trf.xlu0
        %v314 = vpop.trf.xlu0
        %v315 = vpop.trf.xlu0
        %v316 = vpop.trf.xlu0
        %v317 = vpop.trf.xlu0
        %v318 = vpop.trf.xlu0
        %v319 = vpop.trf.xlu0
        %320 = vxpose.xlu0.b32.start [1/16] %v224, 128
        %321 = vxpose.xlu0.b32.cont [2/16] %v226, 128
        %322 = vxpose.xlu0.b32.cont [3/16] %v228, 128
        %323 = vxpose.xlu0.b32.cont [4/16] %v230, 128
        %324 = vxpose.xlu0.b32.cont [5/16] %v232, 128
        %325 = vxpose.xlu0.b32.cont [6/16] %v234, 128
        %326 = vxpose.xlu0.b32.cont [7/16] %v236, 128
        %327 = vxpose.xlu0.b32.cont [8/16] %v238, 128
        %328 = vxpose.xlu0.b32.cont [9/16] %v240, 128
        %329 = vxpose.xlu0.b32.cont [10/16] %v242, 128
        %330 = vxpose.xlu0.b32.cont [11/16] %v244, 128
        %331 = vxpose.xlu0.b32.cont [12/16] %v246, 128
        %332 = vxpose.xlu0.b32.cont [13/16] %v248, 128
        %333 = vxpose.xlu0.b32.cont [14/16] %v250, 128
        %334 = vxpose.xlu0.b32.cont [15/16] %v252, 128
        %335 = vxpose.xlu0.b32.end [16/16] %v254, 128
        %v336 = vpop.trf.xlu0
        %v337 = vpop.trf.xlu0
        %v338 = vpop.trf.xlu0
        %v339 = vpop.trf.xlu0
        %v340 = vpop.trf.xlu0
        %v341 = vpop.trf.xlu0
        %v342 = vpop.trf.xlu0
        %v343 = vpop.trf.xlu0
        %v344 = vpop.trf.xlu0
        %v345 = vpop.trf.xlu0
        %v346 = vpop.trf.xlu0
        %v347 = vpop.trf.xlu0
        %v348 = vpop.trf.xlu0
        %v349 = vpop.trf.xlu0
        %v350 = vpop.trf.xlu0
        %v351 = vpop.trf.xlu0
        %352 = vxpose.xlu0.b32.start [1/16] %v225, 128
        %353 = vxpose.xlu0.b32.cont [2/16] %v227, 128
        %354 = vxpose.xlu0.b32.cont [3/16] %v229, 128
        %355 = vxpose.xlu0.b32.cont [4/16] %v231, 128
        %356 = vxpose.xlu0.b32.cont [5/16] %v233, 128
        %357 = vxpose.xlu0.b32.cont [6/16] %v235, 128
        %358 = vxpose.xlu0.b32.cont [7/16] %v237, 128
        %359 = vxpose.xlu0.b32.cont [8/16] %v239, 128
        %360 = vxpose.xlu0.b32.cont [9/16] %v241, 128
        %361 = vxpose.xlu0.b32.cont [10/16] %v243, 128
        %362 = vxpose.xlu0.b32.cont [11/16] %v245, 128
        %363 = vxpose.xlu0.b32.cont [12/16] %v247, 128
        %364 = vxpose.xlu0.b32.cont [13/16] %v249, 128
        %365 = vxpose.xlu0.b32.cont [14/16] %v251, 128
        %366 = vxpose.xlu0.b32.cont [15/16] %v253, 128
        %367 = vxpose.xlu0.b32.end [16/16] %v255, 128
        %v368 = vpop.trf.xlu0
        %v369 = vpop.trf.xlu0
        %v370 = vpop.trf.xlu0
        %v371 = vpop.trf.xlu0
        %v372 = vpop.trf.xlu0
        %v373 = vpop.trf.xlu0
        %v374 = vpop.trf.xlu0
        %v375 = vpop.trf.xlu0
        %v376 = vpop.trf.xlu0
        %v377 = vpop.trf.xlu0
        %v378 = vpop.trf.xlu0
        %v379 = vpop.trf.xlu0
        %v380 = vpop.trf.xlu0
        %v381 = vpop.trf.xlu0
        %v382 = vpop.trf.xlu0
        %v383 = vpop.trf.xlu0
        %v384 = vadd.f32 %v272, %v273
        %v385 = vadd.f32 %v384, %v274
        %v386 = vadd.f32 %v385, %v275
        %v387 = vadd.f32 %v386, %v276
        %v388 = vadd.f32 %v387, %v277
        %v389 = vadd.f32 %v388, %v278
        %v390 = vadd.f32 %v389, %v279
        %v391 = vadd.f32 %v390, %v280
        %v392 = vadd.f32 %v391, %v281
        %v393 = vadd.f32 %v392, %v282
        %v394 = vadd.f32 %v393, %v283
        %v395 = vadd.f32 %v394, %v284
        %v396 = vadd.f32 %v395, %v285
        %v397 = vadd.f32 %v396, %v286
        %v398 = vadd.f32 %v397, %v287
        %v399 = vadd.f32 %v398, %v304
        %v400 = vadd.f32 %v399, %v305
        %v401 = vadd.f32 %v400, %v306
        %v402 = vadd.f32 %v401, %v307
        %v403 = vadd.f32 %v402, %v308
        %v404 = vadd.f32 %v403, %v309
        %v405 = vadd.f32 %v404, %v310
        %v406 = vadd.f32 %v405, %v311
        %v407 = vadd.f32 %v406, %v312
        %v408 = vadd.f32 %v407, %v313
        %v409 = vadd.f32 %v408, %v314
        %v410 = vadd.f32 %v409, %v315
        %v411 = vadd.f32 %v410, %v316
        %v412 = vadd.f32 %v411, %v317
        %v413 = vadd.f32 %v412, %v318
        %v414 = vadd.f32 %v413, %v319
        %v415 = vrot.slane %v414, 4
        %v416 = vadd.f32 %v414, %v415
        %v417 = vrot.slane %v416, 2
        %v418 = vadd.f32 %v416, %v417
        %v419 = vrot.slane %v418, 1
        %v420 = vadd.f32 %v418, %v419
        %v421 = vadd.f32 %v336, %v337
        %v422 = vadd.f32 %v421, %v338
        %v423 = vadd.f32 %v422, %v339
        %v424 = vadd.f32 %v423, %v340
        %v425 = vadd.f32 %v424, %v341
        %v426 = vadd.f32 %v425, %v342
        %v427 = vadd.f32 %v426, %v343
        %v428 = vadd.f32 %v427, %v344
        %v429 = vadd.f32 %v428, %v345
        %v430 = vadd.f32 %v429, %v346
        %v431 = vadd.f32 %v430, %v347
        %v432 = vadd.f32 %v431, %v348
        %v433 = vadd.f32 %v432, %v349
        %v434 = vadd.f32 %v433, %v350
        %v435 = vadd.f32 %v434, %v351
        %v436 = vadd.f32 %v435, %v368
        %v437 = vadd.f32 %v436, %v369
        %v438 = vadd.f32 %v437, %v370
        %v439 = vadd.f32 %v438, %v371
        %v440 = vadd.f32 %v439, %v372
        %v441 = vadd.f32 %v440, %v373
        %v442 = vadd.f32 %v441, %v374
        %v443 = vadd.f32 %v442, %v375
        %v444 = vadd.f32 %v443, %v376
        %v445 = vadd.f32 %v444, %v377
        %v446 = vadd.f32 %v445, %v378
        %v447 = vadd.f32 %v446, %v379
        %v448 = vadd.f32 %v447, %v380
        %v449 = vadd.f32 %v448, %v381
        %v450 = vadd.f32 %v449, %v382
        %v451 = vadd.f32 %v450, %v383
        %v452 = vrot.slane %v451, 4
        %v453 = vadd.f32 %v451, %v452
        %v454 = vrot.slane %v453, 2
        %v455 = vadd.f32 %v453, %v454
        %v456 = vrot.slane %v455, 1
        %v457 = vadd.f32 %v455, %v456
        %v458 = vmul.f32 %v420, 0.00390625
        %v459 = vmul.f32 %v457, 0.00390625
        %v460 = vld [vmem:[%s1] sm:$0xff]
        %v461 = vld [vmem:[%s1 + $0x8] sm:$0xff]
        %v462 = vld [vmem:[%s1 + $0x10] sm:$0xff]
        %v463 = vld [vmem:[%s1 + $0x18] sm:$0xff]
        %v464 = vld [vmem:[%s1 + $0x20] sm:$0xff]
        %v465 = vld [vmem:[%s1 + $0x28] sm:$0xff]
        %v466 = vld [vmem:[%s1 + $0x30] sm:$0xff]
        %v467 = vld [vmem:[%s1 + $0x38] sm:$0xff]
        %v468 = vld [vmem:[%s1 + $0x40] sm:$0xff]
        %v469 = vld [vmem:[%s1 + $0x48] sm:$0xff]
        %v470 = vld [vmem:[%s1 + $0x50] sm:$0xff]
        %v471 = vld [vmem:[%s1 + $0x58] sm:$0xff]
        %v472 = vld [vmem:[%s1 + $0x60] sm:$0xff]
        %v473 = vld [vmem:[%s1 + $0x68] sm:$0xff]
        %v474 = vld [vmem:[%s1 + $0x70] sm:$0xff]
        %v475 = vld [vmem:[%s1 + $0x78] sm:$0xff]
        %vm478 = vcmask 1041409
        %v479 = vsel %vm478, %v459, %v458
        %481 = vmatprep.subr.mxu0 0.0
        %482 = vmatpush1.msra.mxu0 %v475
        %483 = vmatprep.subr.mxu0 0.0
        %484 = vmatpush1.msra.mxu0 %v474
        %485 = vmatprep.subr.mxu0 0.0
        %486 = vmatpush1.msra.mxu0 %v473
        %487 = vmatprep.subr.mxu0 0.0
        %488 = vmatpush1.msra.mxu0 %v472
        %489 = vmatprep.subr.mxu0 0.0
        %490 = vmatpush1.msra.mxu0 %v471
        %491 = vmatprep.subr.mxu0 0.0
        %492 = vmatpush1.msra.mxu0 %v470
        %493 = vmatprep.subr.mxu0 0.0
        %494 = vmatpush1.msra.mxu0 %v469
        %495 = vmatprep.subr.mxu0 0.0
        %496 = vmatpush1.msra.mxu0 %v468
        %497 = vmatprep.subr.mxu0 0.0
        %498 = vmatpush1.msra.mxu0 %v467
        %499 = vmatprep.subr.mxu0 0.0
        %500 = vmatpush1.msra.mxu0 %v466
        %501 = vmatprep.subr.mxu0 0.0
        %502 = vmatpush1.msra.mxu0 %v465
        %503 = vmatprep.subr.mxu0 0.0
        %504 = vmatpush1.msra.mxu0 %v464
        %505 = vmatprep.subr.mxu0 0.0
        %506 = vmatpush1.msra.mxu0 %v463
        %507 = vmatprep.subr.mxu0 0.0
        %508 = vmatpush1.msra.mxu0 %v462
        %509 = vmatprep.subr.mxu0 0.0
        %510 = vmatpush1.msra.mxu0 %v461
        %511 = vmatprep.subr.mxu0 0.0
        %512 = vmatpush1.msra.mxu0 %v460
        %513 = vmatprep.subr.mxu0 0.0
        %514 = vmatpush2.msra.mxu0 0.0
        %515 = vmatprep.subr.mxu0 0.0
        %516 = vmatpush2.msra.mxu0 0.0
        %517 = vmatprep.subr.mxu0 0.0
        %518 = vmatpush2.msra.mxu0 0.0
        %519 = vmatprep.subr.mxu0 0.0
        %520 = vmatpush2.msra.mxu0 0.0
        %521 = vmatprep.subr.mxu0 0.0
        %522 = vmatpush2.msra.mxu0 0.0
        %523 = vmatprep.subr.mxu0 0.0
        %524 = vmatpush2.msra.mxu0 0.0
        %525 = vmatprep.subr.mxu0 0.0
        %526 = vmatpush2.msra.mxu0 0.0
        %527 = vmatprep.subr.mxu0 0.0
        %528 = vmatpush2.msra.mxu0 0.0
        %529 = vmatprep.subr.mxu0 0.0
        %530 = vmatpush2.msra.mxu0 0.0
        %531 = vmatprep.subr.mxu0 0.0
        %532 = vmatpush2.msra.mxu0 0.0
        %533 = vmatprep.subr.mxu0 0.0
        %534 = vmatpush2.msra.mxu0 0.0
        %535 = vmatprep.subr.mxu0 0.0
        %536 = vmatpush2.msra.mxu0 0.0
        %537 = vmatprep.subr.mxu0 0.0
        %538 = vmatpush2.msra.mxu0 0.0
        %539 = vmatprep.subr.mxu0 0.0
        %540 = vmatpush2.msra.mxu0 0.0
        %541 = vmatprep.subr.mxu0 0.0
        %542 = vmatpush2.msra.mxu0 0.0
        %543 = vmatprep.subr.mxu0 0.0
        %544 = vmatpush2.msra.mxu0 0.0
        %545 = vmatprep.mubr.f32.mxu0 0.0
        %546 = vmatmul.mubr.f32.gmra.mxu0 %v479
        %v547 = vpop.f32.mrf.mxu0
        %v548 = vadd.f32 0.0, %v547
        %v549 = vpop.f32.mrf.mxu0
        %550 = vdwg.mxu0
        %v551 = vmax.f32 %v548, 0.0
        %v552 = vld [vmem:[%s2] sm:$0xff]
        %vm553 = vcmask 64512
        %v555 = vsel %vm553, %v551, 0
        %557 = vmatprep.subr.mxu0 0.0
        %558 = vmatpush1.msra.mxu0 0.0
        %559 = vmatprep.subr.mxu0 0.0
        %560 = vmatpush1.msra.mxu0 0.0
        %561 = vmatprep.subr.mxu0 0.0
        %562 = vmatpush1.msra.mxu0 0.0
        %563 = vmatprep.subr.mxu0 0.0
        %564 = vmatpush1.msra.mxu0 0.0
        %565 = vmatprep.subr.mxu0 0.0
        %566 = vmatpush1.msra.mxu0 0.0
        %567 = vmatprep.subr.mxu0 0.0
        %568 = vmatpush1.msra.mxu0 0.0
        %569 = vmatprep.subr.mxu0 0.0
        %570 = vmatpush1.msra.mxu0 0.0
        %571 = vmatprep.subr.mxu0 0.0
        %572 = vmatpush1.msra.mxu0 0.0
        %573 = vmatprep.subr.mxu0 0.0
        %574 = vmatpush1.msra.mxu0 0.0
        %575 = vmatprep.subr.mxu0 0.0
        %576 = vmatpush1.msra.mxu0 0.0
        %577 = vmatprep.subr.mxu0 0.0
        %578 = vmatpush1.msra.mxu0 0.0
        %579 = vmatprep.subr.mxu0 0.0
        %580 = vmatpush1.msra.mxu0 0.0
        %581 = vmatprep.subr.mxu0 0.0
        %582 = vmatpush1.msra.mxu0 0.0
        %583 = vmatprep.subr.mxu0 0.0
        %584 = vmatpush1.msra.mxu0 0.0
        %585 = vmatprep.subr.mxu0 0.0
        %586 = vmatpush1.msra.mxu0 0.0
        %587 = vmatprep.subr.mxu0 0.0
        %588 = vmatpush1.msra.mxu0 %v552
        %589 = vmatprep.subr.mxu0 0.0
        %590 = vmatpush2.msra.mxu0 0.0
        %591 = vmatprep.subr.mxu0 0.0
        %592 = vmatpush2.msra.mxu0 0.0
        %593 = vmatprep.subr.mxu0 0.0
        %594 = vmatpush2.msra.mxu0 0.0
        %595 = vmatprep.subr.mxu0 0.0
        %596 = vmatpush2.msra.mxu0 0.0
        %597 = vmatprep.subr.mxu0 0.0
        %598 = vmatpush2.msra.mxu0 0.0
        %599 = vmatprep.subr.mxu0 0.0
        %600 = vmatpush2.msra.mxu0 0.0
        %601 = vmatprep.subr.mxu0 0.0
        %602 = vmatpush2.msra.mxu0 0.0
        %603 = vmatprep.subr.mxu0 0.0
        %604 = vmatpush2.msra.mxu0 0.0
        %605 = vmatprep.subr.mxu0 0.0
        %606 = vmatpush2.msra.mxu0 0.0
        %607 = vmatprep.subr.mxu0 0.0
        %608 = vmatpush2.msra.mxu0 0.0
        %609 = vmatprep.subr.mxu0 0.0
        %610 = vmatpush2.msra.mxu0 0.0
        %611 = vmatprep.subr.mxu0 0.0
        %612 = vmatpush2.msra.mxu0 0.0
        %613 = vmatprep.subr.mxu0 0.0
        %614 = vmatpush2.msra.mxu0 0.0
        %615 = vmatprep.subr.mxu0 0.0
        %616 = vmatpush2.msra.mxu0 0.0
        %617 = vmatprep.subr.mxu0 0.0
        %618 = vmatpush2.msra.mxu0 0.0
        %619 = vmatprep.subr.mxu0 0.0
        %620 = vmatpush2.msra.mxu0 0.0
        %621 = vmatprep.mubr.f32.mxu0 0.0
        %622 = vmatmul.mubr.f32.gmra.mxu0 %v555
        %v623 = vpop.f32.mrf.mxu0
        %v624 = vadd.f32 0.0, %v623
        %v625 = vpop.f32.mrf.mxu0
        %626 = vdwg.mxu0
        %v627 = vxor.u32 %v624, 2147483648
        %v628 = vmul.f32 %v627, 1.442695
        %v629 = vpow.pop %v628
        %v630 = vadd.f32 %v629, 1.0
        %v631 = vrcp.pop %v630
        %v632 = vmul.f32 1.0, %v631
        %v635 = vunpack.c.l.s4 1966171168
        %v636 = vunpack.c.0.s8 %v635
        %v637 = vlaneseq
        %v638 = vshrl.u32 %v637, 7
        %v639 = vsub.s32 %v636, %v638
        %v640 = vrot.slane %v632, %v639
        %v641 = vcombine.high %v640, %v640
        %v643 = vunpack.c.l.s4 1966171168
        %v644 = vunpack.c.0.s8 %v643
        %v645 = vlaneseq
        %v646 = vshrl.u32 %v645, 7
        %v647 = vsub.s32 %v644, %v646
        %v648 = vrot.slane %v640, %v647
        %v650 = vunpack.c.l.s4 1966171168
        %v651 = vunpack.c.0.s8 %v650
        %v652 = vlaneseq
        %v653 = vshrl.u32 %v652, 7
        %v654 = vsub.s32 %v651, %v653
        %v655 = vrot.slane %v641, %v654
        %v656 = vlaneseq
        %v657 = vshrl.u32 %v656, 7
        %v658 = vsub.s32 0, %v657
        %v659 = vrot.slane %v648, %v658
        %v660 = vlaneseq
        %v661 = vshrl.u32 %v660, 7
        %v662 = vsub.s32 0, %v661
        %v663 = vrot.slane %v655, %v662
        %v666 = vmul.f32 %v272, %v659
        %v667 = vmul.f32 %v273, %v659
        %v668 = vmul.f32 %v274, %v659
        %v669 = vmul.f32 %v275, %v659
        %v670 = vmul.f32 %v276, %v659
        %v671 = vmul.f32 %v277, %v659
        %v672 = vmul.f32 %v278, %v659
        %v673 = vmul.f32 %v279, %v659
        %v674 = vmul.f32 %v280, %v659
        %v675 = vmul.f32 %v281, %v659
        %v676 = vmul.f32 %v282, %v659
        %v677 = vmul.f32 %v283, %v659
        %v678 = vmul.f32 %v284, %v659
        %v679 = vmul.f32 %v285, %v659
        %v680 = vmul.f32 %v286, %v659
        %v681 = vmul.f32 %v287, %v659
        %v682 = vmul.f32 %v304, %v659
        %v683 = vmul.f32 %v305, %v659
        %v684 = vmul.f32 %v306, %v659
        %v685 = vmul.f32 %v307, %v659
        %v686 = vmul.f32 %v308, %v659
        %v687 = vmul.f32 %v309, %v659
        %v688 = vmul.f32 %v310, %v659
        %v689 = vmul.f32 %v311, %v659
        %v690 = vmul.f32 %v312, %v659
        %v691 = vmul.f32 %v313, %v659
        %v692 = vmul.f32 %v314, %v659
        %v693 = vmul.f32 %v315, %v659
        %v694 = vmul.f32 %v316, %v659
        %v695 = vmul.f32 %v317, %v659
        %v696 = vmul.f32 %v318, %v659
        %v697 = vmul.f32 %v319, %v659
        %v698 = vmul.f32 %v336, %v663
        %v699 = vmul.f32 %v337, %v663
        %v700 = vmul.f32 %v338, %v663
        %v701 = vmul.f32 %v339, %v663
        %v702 = vmul.f32 %v340, %v663
        %v703 = vmul.f32 %v341, %v663
        %v704 = vmul.f32 %v342, %v663
        %v705 = vmul.f32 %v343, %v663
        %v706 = vmul.f32 %v344, %v663
        %v707 = vmul.f32 %v345, %v663
        %v708 = vmul.f32 %v346, %v663
        %v709 = vmul.f32 %v347, %v663
        %v710 = vmul.f32 %v348, %v663
        %v711 = vmul.f32 %v349, %v663
        %v712 = vmul.f32 %v350, %v663
        %v713 = vmul.f32 %v351, %v663
        %v714 = vmul.f32 %v368, %v663
        %v715 = vmul.f32 %v369, %v663
        %v716 = vmul.f32 %v370, %v663
        %v717 = vmul.f32 %v371, %v663
        %v718 = vmul.f32 %v372, %v663
        %v719 = vmul.f32 %v373, %v663
        %v720 = vmul.f32 %v374, %v663
        %v721 = vmul.f32 %v375, %v663
        %v722 = vmul.f32 %v376, %v663
        %v723 = vmul.f32 %v377, %v663
        %v724 = vmul.f32 %v378, %v663
        %v725 = vmul.f32 %v379, %v663
        %v726 = vmul.f32 %v380, %v663
        %v727 = vmul.f32 %v381, %v663
        %v728 = vmul.f32 %v382, %v663
        %v729 = vmul.f32 %v383, %v663
        %730 = vst [vmem:[%s189] sm:$0xff] %v666
        %731 = vst [vmem:[%s189 + $0x8] sm:$0xff] %v667
        %732 = vst [vmem:[%s189 + $0x10] sm:$0xff] %v668
        %733 = vst [vmem:[%s189 + $0x18] sm:$0xff] %v669
        %734 = vst [vmem:[%s189 + $0x20] sm:$0xff] %v670
        %735 = vst [vmem:[%s189 + $0x28] sm:$0xff] %v671
        %736 = vst [vmem:[%s189 + $0x30] sm:$0xff] %v672
        %737 = vst [vmem:[%s189 + $0x38] sm:$0xff] %v673
        %738 = vst [vmem:[%s189 + $0x40] sm:$0xff] %v674
        %739 = vst [vmem:[%s189 + $0x48] sm:$0xff] %v675
        %740 = vst [vmem:[%s189 + $0x50] sm:$0xff] %v676
        %741 = vst [vmem:[%s189 + $0x58] sm:$0xff] %v677
        %742 = vst [vmem:[%s189 + $0x60] sm:$0xff] %v678
        %743 = vst [vmem:[%s189 + $0x68] sm:$0xff] %v679
        %744 = vst [vmem:[%s189 + $0x70] sm:$0xff] %v680
        %745 = vst [vmem:[%s189 + $0x78] sm:$0xff] %v681
        %746 = vst [vmem:[%s189 + $0x80] sm:$0xff] %v682
        %747 = vst [vmem:[%s189 + $0x88] sm:$0xff] %v683
        %748 = vst [vmem:[%s189 + $0x90] sm:$0xff] %v684
        %749 = vst [vmem:[%s189 + $0x98] sm:$0xff] %v685
        %750 = vst [vmem:[%s189 + $0xa0] sm:$0xff] %v686
        %751 = vst [vmem:[%s189 + $0xa8] sm:$0xff] %v687
        %752 = vst [vmem:[%s189 + $0xb0] sm:$0xff] %v688
        %753 = vst [vmem:[%s189 + $0xb8] sm:$0xff] %v689
        %754 = vst [vmem:[%s189 + $0xc0] sm:$0xff] %v690
        %755 = vst [vmem:[%s189 + $0xc8] sm:$0xff] %v691
        %756 = vst [vmem:[%s189 + $0xd0] sm:$0xff] %v692
        %757 = vst [vmem:[%s189 + $0xd8] sm:$0xff] %v693
        %758 = vst [vmem:[%s189 + $0xe0] sm:$0xff] %v694
        %759 = vst [vmem:[%s189 + $0xe8] sm:$0xff] %v695
        %760 = vst [vmem:[%s189 + $0xf0] sm:$0xff] %v696
        %761 = vst [vmem:[%s189 + $0xf8] sm:$0xff] %v697
        %762 = vst [vmem:[%s189 + $0x100] sm:$0xff] %v698
        %763 = vst [vmem:[%s189 + $0x108] sm:$0xff] %v699
        %764 = vst [vmem:[%s189 + $0x110] sm:$0xff] %v700
        %765 = vst [vmem:[%s189 + $0x118] sm:$0xff] %v701
        %766 = vst [vmem:[%s189 + $0x120] sm:$0xff] %v702
        %767 = vst [vmem:[%s189 + $0x128] sm:$0xff] %v703
        %768 = vst [vmem:[%s189 + $0x130] sm:$0xff] %v704
        %769 = vst [vmem:[%s189 + $0x138] sm:$0xff] %v705
        %770 = vst [vmem:[%s189 + $0x140] sm:$0xff] %v706
        %771 = vst [vmem:[%s189 + $0x148] sm:$0xff] %v707
        %772 = vst [vmem:[%s189 + $0x150] sm:$0xff] %v708
        %773 = vst [vmem:[%s189 + $0x158] sm:$0xff] %v709
        %774 = vst [vmem:[%s189 + $0x160] sm:$0xff] %v710
        %775 = vst [vmem:[%s189 + $0x168] sm:$0xff] %v711
        %776 = vst [vmem:[%s189 + $0x170] sm:$0xff] %v712
        %777 = vst [vmem:[%s189 + $0x178] sm:$0xff] %v713
        %778 = vst [vmem:[%s189 + $0x180] sm:$0xff] %v714
        %779 = vst [vmem:[%s189 + $0x188] sm:$0xff] %v715
        %780 = vst [vmem:[%s189 + $0x190] sm:$0xff] %v716
        %781 = vst [vmem:[%s189 + $0x198] sm:$0xff] %v717
        %782 = vst [vmem:[%s189 + $0x1a0] sm:$0xff] %v718
        %783 = vst [vmem:[%s189 + $0x1a8] sm:$0xff] %v719
        %784 = vst [vmem:[%s189 + $0x1b0] sm:$0xff] %v720
        %785 = vst [vmem:[%s189 + $0x1b8] sm:$0xff] %v721
        %786 = vst [vmem:[%s189 + $0x1c0] sm:$0xff] %v722
        %787 = vst [vmem:[%s189 + $0x1c8] sm:$0xff] %v723
        %788 = vst [vmem:[%s189 + $0x1d0] sm:$0xff] %v724
        %789 = vst [vmem:[%s189 + $0x1d8] sm:$0xff] %v725
        %790 = vst [vmem:[%s189 + $0x1e0] sm:$0xff] %v726
        %791 = vst [vmem:[%s189 + $0x1e8] sm:$0xff] %v727
        %792 = vst [vmem:[%s189 + $0x1f0] sm:$0xff] %v728
        %793 = vst [vmem:[%s189 + $0x1f8] sm:$0xff] %v729
        %s794 = sand.u32 %s96, 1
        %s795 = scalar_lea.sflag [#allocation4], %s794
        %s796 = sand.u32 %s96, 1
        %s797 = smul.addr %s796, 512
        %s798 = scalar_lea.vmem [#allocation5], %s797
        // Predicated region
        $region37: #{tpu_custom_call.1} parent=31 // pred_check
          %p799 = pneg %p106
        $region38: #{tpu_custom_call.1} parent=31 // pred_check_branch
          %801 = sbr.rel (%p799) target = $region40
        $region39: #{tpu_custom_call.1} parent=31 // pred_region
          %s802 = smul.u32 2, %s20
          %s804 = ssub.s32 8192, 8192
          %805 = vsyncadd %s795, %s804
          %s806 = smul.addr %s802, 32
          %s807 = smul.addr %s806, 128
          %s808 = scalar_lea.hbm %s3, %s807
          %s809 = sshll.u32 %s798, 4
          %s810 = int_to_ptr.vmem [resolvable:$true] %s809
          %815 = dma.vmem_to_hbm [thread:$0]  %s810, 8192, %s808, %s795, 128, 128, 8
        $region40: #{tpu_custom_call.1} parent=31 // pred_fallthru
          _
      $region32: #{tpu_custom_call.1} parent=5 // pred_fallthru
        _
      %p816 = scmp.le.s32.totalorder 2, %s15
      // Predicated region
      $region41: #{tpu_custom_call.1} parent=5 // pred_check
        %p817 = pneg %p816
      $region42: #{tpu_custom_call.1} parent=5 // pred_check_branch
        %819 = sbr.rel (%p817) target = $region44
      $region43: #{tpu_custom_call.1} parent=5 // pred_region
        %s820 = ssub.s32 %s15, 2
        // Predicated region
        $region45: #{tpu_custom_call.1} parent=43 // pred_check
          %p821 = pneg %p112
        $region46: #{tpu_custom_call.1} parent=43 // pred_check_branch
          %823 = sbr.rel (%p821) target = $region48
        $region47: #{tpu_custom_call.1} parent=43 // pred_region
          %s824 = sand.u32 %s97, 1
          %s825 = scalar_lea.sflag [#allocation4], %s824
          %s826 = sand.u32 %s97, 1
          %s827 = smul.addr %s826, 512
          %s828 = scalar_lea.vmem [#allocation5], %s827
          %829 = dma.done %s825, 8192
        $region48: #{tpu_custom_call.1} parent=43 // pred_fallthru
          _
      $region44: #{tpu_custom_call.1} parent=5 // pred_fallthru
        _
    $region6: #{tpu_custom_call.1} parent=1 // loop_footer
      %s19 = sadd.s32 1, %s15
    $region7: #{tpu_custom_call.1} parent=1 // loop_footer_branch
      %14 = sbr.rel target = $region3
    $region8: #{tpu_custom_call.1} parent=1 // loop_exit
      _
    %830 = vsyncpa [#allocation3], 1
    %s831 = scalar_lea.sflag [#allocation3], 1
    %832 = vsyncpa %s831, 1
    %833 = vsyncpa [#allocation4], 1
    %s834 = scalar_lea.sflag [#allocation4], 1
    %835 = vsyncpa %s834, 1

</llo_original>
